<compile_context>
chip_gen: v6e
topology: v6e:2x2x1
jax: 0.10.0
libtpu: 0.0.40
codegen_flags: <defaults>
</compile_context>

<pallas_src>
import functools

import jax
import jax.numpy as jnp
from jax.experimental import pallas as pl
from jax.experimental.pallas import tpu as pltpu


# --------------------------------------------------------------------------
# Pallas kernel: one batch tile (TB rows) per grid step.  Pure chain of 2-D
# matmuls with batch as the M/sublane dim; everything stays f32 (no bf16
# intermediates — keeps v5e happy).
# --------------------------------------------------------------------------
def _nbvae_kernel(x_ref, eps_ref,
                  w1_ref, b1_ref, w2_ref, b2_ref,
                  wml_ref, bml_ref,
                  wh_ref, bh_ref, w3_ref, b3_ref, w4_ref, b4_ref,
                  wp_ref, bp_ref,
                  r_ref, stats_ref, *, L):
    f32 = jnp.float32
    relu = lambda a: jnp.maximum(a, 0.0)

    x = x_ref[...]                      # (TB, G*V)   flattened g*V+v
    eps = eps_ref[...]                  # (TB, L)

    # ---------------- Encoder ----------------
    # reduced_variants (already in "g-major, v-minor" flat layout)
    rv = relu(jnp.dot(x, w1_ref[...], preferred_element_type=f32) + b1_ref[...])      # (TB, G*VS)
    # reduced_genes: transpose + reduce_genes folded into w2 -> flat (v*GS+k)
    rg = relu(jnp.dot(rv, w2_ref[...], preferred_element_type=f32) + b2_ref[...])     # (TB, VS*GS)
    # fused fc_mean | fc_logvar
    ml = jnp.dot(rg, wml_ref[...], preferred_element_type=f32) + bml_ref[...]         # (TB, 2L)
    mean = ml[:, :L]
    logvar = ml[:, L:]

    # reparameterise: latent = mean + exp(0.5*logvar) * eps
    latent = mean + jnp.exp(0.5 * logvar) * eps                                       # (TB, L)

    # ---------------- Decoder ----------------
    hidden = relu(jnp.dot(latent, wh_ref[...], preferred_element_type=f32)
                  + bh_ref[...])                                                      # (TB, VS*GS)
    # inflate_genes (block-diagonal over VS) -> flat (v*G+g)
    ig = relu(jnp.dot(hidden, w3_ref[...], preferred_element_type=f32) + b3_ref[...])  # (TB, VS*G)
    # transpose + inflate_variants folded into w4 -> flat (g*V+v); lane-dense store
    r_ref[...] = jnp.exp(jnp.dot(ig, w4_ref[...], preferred_element_type=f32)
                         + b4_ref[...])                                               # (TB, G*V)

    # reconstruction_p
    p = jnp.dot(latent, wp_ref[...], preferred_element_type=f32) + bp_ref[...]        # (TB, 1)

    # packed stats output: [mean | logvar | p]
    stats_ref[:, : 2 * L] = ml
    stats_ref[:, 2 * L:] = p


# --------------------------------------------------------------------------
# One-time parameter preparation: fold the per-batch transposes into the
# weights (block-diagonal expansion) and fuse fc_mean/fc_logvar.
# --------------------------------------------------------------------------
def prepare_params(params, *, G, V, GS, VS):
    eye_g = jnp.eye(G, dtype=jnp.float32)
    eye_vs = jnp.eye(VS, dtype=jnp.float32)

    # reduce_variants applied per gene: W1[(g'*V+v'), (g*VS+v)] = d(g',g)*wrv[v',v]
    w1 = jnp.kron(eye_g, params["wrv"])                       # (G*V, G*VS)
    b1 = jnp.tile(params["brv"], (1, G))                      # (1, G*VS)

    # transpose + reduce_genes: W2[(g*VS+v'), (v*GS+k)] = d(v',v)*wrg[g,k]
    w2 = (eye_vs[None, :, :, None]
          * params["wrg"][:, None, None, :]).reshape(G * VS, VS * GS)
    b2 = jnp.tile(params["brg"], (1, VS))                     # (1, VS*GS)

    # fused fc_mean | fc_logvar
    wml = jnp.concatenate([params["wm"], params["wlv"]], axis=1)   # (VS*GS, 2L)
    bml = jnp.concatenate([params["bm"], params["blv"]], axis=1)   # (1, 2L)

    # inflate_genes per variant-signature: W3 = kron(I_VS, wig)
    w3 = jnp.kron(eye_vs, params["wig"])                      # (VS*GS, VS*G)
    b3 = jnp.tile(params["big"], (1, VS))                     # (1, VS*G)

    # transpose + inflate_variants: W4[(s*G+g'), (g*V+v)] = d(g',g)*wiv[s,v]
    w4 = (eye_g[None, :, :, None]
          * params["wiv"][:, None, None, :]).reshape(VS * G, G * V)
    b4 = jnp.tile(params["biv"], (1, G))                      # (1, G*V)

    return dict(w1=w1, b1=b1, w2=w2, b2=b2, wml=wml, bml=bml,
                wh=params["wh"], bh=params["bh"],
                w3=w3, b3=b3, w4=w4, b4=b4,
                wp=params["wp"], bp=params["bp"])


def _default_batch_tile(B):
    # v7x has 2 TensorCores: give the grid >=2 steps when each step still has
    # >=8 sublanes of batch; otherwise a single step (per-step overhead wins).
    if B % 16 == 0:
        return B // 2
    return B


# --------------------------------------------------------------------------
# Wrapper: lane-dense in/out plumbing + pallas_call.
# --------------------------------------------------------------------------
def nbvae_forward(x, eps, prepared, *, latent_dim, batch_tile=None):
    B, G, V = x.shape
    L = latent_dim
    GV = G * V
    x_flat = x.reshape(B, GV).astype(jnp.float32)   # row-major: col = g*V + v

    TB = batch_tile if batch_tile is not None else _default_batch_tile(B)
    assert B % TB == 0 and (TB == B or TB % 8 == 0), "batch_tile must divide B and be B or a multiple of 8"
    n_steps = B // TB

    weight_keys = ["w1", "b1", "w2", "b2", "wml", "bml",
                   "wh", "bh", "w3", "b3", "w4", "b4", "wp", "bp"]
    weights = [prepared[k] for k in weight_keys]

    def tile_spec(width):
        return pl.BlockSpec((TB, width), lambda b: (b, 0))

    def full_spec(shape):
        return pl.BlockSpec(tuple(shape), lambda b: (0,) * len(shape))

    in_specs = [tile_spec(GV), tile_spec(L)] + [full_spec(w.shape) for w in weights]
    out_shape = (jax.ShapeDtypeStruct((B, GV), jnp.float32),        # reconstruction_r (flat)
                 jax.ShapeDtypeStruct((B, 2 * L + 1), jnp.float32)) # [mean | logvar | p]
    out_specs = (tile_spec(GV), tile_spec(2 * L + 1))

    # Advisory cost estimate so XLA schedules sensibly around the call.
    mm = [prepared[k] for k in ("w1", "w2", "wml", "wh", "w3", "w4", "wp")]
    flops = int(2 * B * sum(w.shape[0] * w.shape[1] for w in mm))
    transc = int(B * (GV + L))
    bytes_acc = int(x_flat.size * 4 + eps.size * 4
                    + n_steps * sum(w.size * 4 for w in weights)
                    + B * (GV + 2 * L + 1) * 4)

    r_flat, stats = pl.pallas_call(
        functools.partial(_nbvae_kernel, L=L),
        out_shape=out_shape,
        grid=(n_steps,),
        in_specs=in_specs,
        out_specs=out_specs,
        compiler_params=pltpu.CompilerParams(
            dimension_semantics=("parallel",)),
        cost_estimate=pl.CostEstimate(flops=flops, transcendentals=transc,
                                      bytes_accessed=bytes_acc),
    )(x_flat, eps, *weights)

    r = r_flat.reshape(B, G, V)
    mean = stats[:, :L]
    logvar = stats[:, L:2 * L]
    p = stats[:, 2 * L]
    return r, p, mean, logvar


# --------------------------------------------------------------------------
# Deterministic parameter init (PyTorch-Linear-style uniform).  Weights are
# stored already transposed to (in_features, out_features).
# --------------------------------------------------------------------------
def init_params(key, G, V, GS, VS, L):
    ks = jax.random.split(key, 16)

    def lin(k, fan_in, shape):
        bound = 1.0 / float(fan_in) ** 0.5
        return jax.random.uniform(k, shape, jnp.float32, -bound, bound)

    H = GS * VS
    return dict(
        wrv=lin(ks[0], V, (V, VS)),   brv=lin(ks[1], V, (1, VS)),     # reduce_variants
        wrg=lin(ks[2], G, (G, GS)),   brg=lin(ks[3], G, (1, GS)),     # reduce_genes
        wm=lin(ks[4], H, (H, L)),     bm=lin(ks[5], H, (1, L)),       # fc_mean
        wlv=lin(ks[6], H, (H, L)),    blv=lin(ks[7], H, (1, L)),      # fc_logvar
        wh=lin(ks[8], L, (L, H)),     bh=lin(ks[9], L, (1, H)),       # hidden_layer
        wig=lin(ks[10], GS, (GS, G)), big=lin(ks[11], GS, (1, G)),    # inflate_genes
        wiv=lin(ks[12], VS, (VS, V)), biv=lin(ks[13], VS, (1, V)),    # inflate_variants
        wp=lin(ks[14], L, (L, 1)),    bp=lin(ks[15], L, (1, 1)),      # reconstruction_p
    )


# --------------------------------------------------------------------------
# Pure-JAX reference (mirrors the PyTorch forward exactly, using the RAW
# un-folded parameters) for verification of the kron folding + kernel.
# --------------------------------------------------------------------------
def ref_forward(x, eps, p, GS, VS):
    relu = lambda a: jnp.maximum(a, 0.0)
    B = x.shape[0]
    rv = relu(jnp.einsum("bgv,vs->bgs", x, p["wrv"]) + p["brv"])          # (B,G,VS)
    rvT = jnp.swapaxes(rv, -1, -2)                                        # (B,VS,G)
    rg = relu(jnp.einsum("bsg,gk->bsk", rvT, p["wrg"]) + p["brg"])        # (B,VS,GS)
    flat = rg.reshape(B, VS * GS)
    mean = flat @ p["wm"] + p["bm"][0]
    logvar = flat @ p["wlv"] + p["blv"][0]
    latent = mean + jnp.exp(0.5 * logvar) * eps
    hidden = relu(latent @ p["wh"] + p["bh"][0])
    h2 = hidden.reshape(B, VS, GS)
    ig = relu(jnp.einsum("bsk,kg->bsg", h2, p["wig"]) + p["big"])         # (B,VS,G)
    igT = jnp.swapaxes(ig, -1, -2)                                        # (B,G,VS)
    r = jnp.exp(jnp.einsum("bgs,sv->bgv", igT, p["wiv"]) + p["biv"])      # (B,G,V)
    pp = (latent @ p["wp"] + p["bp"][0])[:, 0]                            # (B,)
    return r, pp, mean, logvar


if __name__ == "__main__":
    # NBVAE(n_genes=16, n_variants=16, n_gene_signatures=4,
    #       n_variant_signatures=4, latent_dim=8), batch=2.
    B, G, V, GS, VS, L = 2, 16, 16, 4, 4, 8

    key = jax.random.PRNGKey(0)
    kx, keps, kparam = jax.random.split(key, 3)
    x = jax.random.uniform(kx, (B, G, V), jnp.float32)     # non-negative count-like data
    eps = jax.random.normal(keps, (B, L), jnp.float32)     # reparameterisation noise
    params = init_params(kparam, G, V, GS, VS, L)
    prepared = prepare_params(params, G=G, V=V, GS=GS, VS=VS)   # once, not per call

    fwd = jax.jit(functools.partial(nbvae_forward, latent_dim=L))
    r, p, mean, logvar = fwd(x, eps, prepared)
    jax.block_until_ready((r, p, mean, logvar))

    rr, pr, mr, lr = ref_forward(x, eps, params, GS, VS)
    assert r.shape == (B, G, V) and p.shape == (B,)
    assert mean.shape == (B, L) and logvar.shape == (B, L)
    assert jnp.allclose(r, rr, rtol=1e-3, atol=1e-4)
    assert jnp.allclose(p, pr, rtol=1e-3, atol=1e-4)
    assert jnp.allclose(mean, mr, rtol=1e-3, atol=1e-4)
    assert jnp.allclose(logvar, lr, rtol=1e-3, atol=1e-4)

    print("KERNEL_OK")
</pallas_src>

<mosaic_0001>
module attributes {stable_mosaic.version = 11 : i64} {
  func.func @_nbvae_kernel(%arg0: i32, %arg1: memref<2x256xf32, #tpu.memory_space<vmem>>, %arg2: memref<2x8xf32, #tpu.memory_space<vmem>>, %arg3: memref<256x64xf32, #tpu.memory_space<vmem>>, %arg4: memref<1x64xf32, #tpu.memory_space<vmem>>, %arg5: memref<64x16xf32, #tpu.memory_space<vmem>>, %arg6: memref<1x16xf32, #tpu.memory_space<vmem>>, %arg7: memref<16x16xf32, #tpu.memory_space<vmem>>, %arg8: memref<1x16xf32, #tpu.memory_space<vmem>>, %arg9: memref<8x16xf32, #tpu.memory_space<vmem>>, %arg10: memref<1x16xf32, #tpu.memory_space<vmem>>, %arg11: memref<16x64xf32, #tpu.memory_space<vmem>>, %arg12: memref<1x64xf32, #tpu.memory_space<vmem>>, %arg13: memref<64x256xf32, #tpu.memory_space<vmem>>, %arg14: memref<1x256xf32, #tpu.memory_space<vmem>>, %arg15: memref<8x1xf32, #tpu.memory_space<vmem>>, %arg16: memref<1x1xf32, #tpu.memory_space<vmem>>, %arg17: memref<2x256xf32, #tpu.memory_space<vmem>>, %arg18: memref<2x17xf32, #tpu.memory_space<vmem>>) attributes {dimension_semantics = [#tpu.dimension_semantics<parallel>], iteration_bounds = array<i64: 1>, scalar_prefetch = 0 : i64, scratch_operands = 0 : i64, tpu.core_type = #tpu.core_type<tc>, window_params = [{transform_indices = @transform_0, window_bounds = array<i64: 2, 256>}, {transform_indices = @transform_1, window_bounds = array<i64: 2, 8>}, {pipeline_mode = #tpu.pipeline_mode<synchronous>, transform_indices = @transform_2, window_bounds = array<i64: 256, 64>}, {pipeline_mode = #tpu.pipeline_mode<synchronous>, transform_indices = @transform_3, window_bounds = array<i64: 1, 64>}, {pipeline_mode = #tpu.pipeline_mode<synchronous>, transform_indices = @transform_4, window_bounds = array<i64: 64, 16>}, {pipeline_mode = #tpu.pipeline_mode<synchronous>, transform_indices = @transform_5, window_bounds = array<i64: 1, 16>}, {pipeline_mode = #tpu.pipeline_mode<synchronous>, transform_indices = @transform_6, window_bounds = array<i64: 16, 16>}, {pipeline_mode = #tpu.pipeline_mode<synchronous>, transform_indices = @transform_7, window_bounds = array<i64: 1, 16>}, {pipeline_mode = #tpu.pipeline_mode<synchronous>, transform_indices = @transform_8, window_bounds = array<i64: 8, 16>}, {pipeline_mode = #tpu.pipeline_mode<synchronous>, transform_indices = @transform_9, window_bounds = array<i64: 1, 16>}, {pipeline_mode = #tpu.pipeline_mode<synchronous>, transform_indices = @transform_10, window_bounds = array<i64: 16, 64>}, {pipeline_mode = #tpu.pipeline_mode<synchronous>, transform_indices = @transform_11, window_bounds = array<i64: 1, 64>}, {pipeline_mode = #tpu.pipeline_mode<synchronous>, transform_indices = @transform_12, window_bounds = array<i64: 64, 256>}, {pipeline_mode = #tpu.pipeline_mode<synchronous>, transform_indices = @transform_13, window_bounds = array<i64: 1, 256>}, {pipeline_mode = #tpu.pipeline_mode<synchronous>, transform_indices = @transform_14, window_bounds = array<i64: 8, 1>}, {pipeline_mode = #tpu.pipeline_mode<synchronous>, transform_indices = @transform_15, window_bounds = array<i64: 1, 1>}, {transform_indices = @transform_16, window_bounds = array<i64: 2, 256>}, {transform_indices = @transform_17, window_bounds = array<i64: 2, 17>}]} {
    %c0 = arith.constant 0 : index
    %c0_0 = arith.constant 0 : index
    %0 = vector.load %arg1[%c0, %c0_0] : memref<2x256xf32, #tpu.memory_space<vmem>>, vector<2x256xf32>
    %c0_1 = arith.constant 0 : index
    %c0_2 = arith.constant 0 : index
    %1 = vector.load %arg2[%c0_1, %c0_2] : memref<2x8xf32, #tpu.memory_space<vmem>>, vector<2x8xf32>
    %c0_3 = arith.constant 0 : index
    %c0_4 = arith.constant 0 : index
    %2 = vector.load %arg3[%c0_3, %c0_4] : memref<256x64xf32, #tpu.memory_space<vmem>>, vector<256x64xf32>
    %cst = arith.constant dense<0.000000e+00> : vector<2x64xf32>
    %3 = tpu.matmul %0, %2, %cst {dimension_numbers = #tpu.dot_dimension_numbers<[1], [0], [0], [1], [0, 0, 1, 1], [], []>} : vector<2x256xf32>, vector<256x64xf32>, vector<2x64xf32> -> vector<2x64xf32>
    %c0_5 = arith.constant 0 : index
    %c0_6 = arith.constant 0 : index
    %4 = vector.load %arg4[%c0_5, %c0_6] : memref<1x64xf32, #tpu.memory_space<vmem>>, vector<1x64xf32>
    %5 = vector.broadcast %4 : vector<1x64xf32> to vector<2x64xf32>
    %6 = arith.addf %3, %5 : vector<2x64xf32>
    %cst_7 = arith.constant 0.000000e+00 : f32
    %7 = vector.broadcast %cst_7 : f32 to vector<2x64xf32>
    %8 = arith.maximumf %6, %7 : vector<2x64xf32>
    %c0_8 = arith.constant 0 : index
    %c0_9 = arith.constant 0 : index
    %9 = vector.load %arg5[%c0_8, %c0_9] : memref<64x16xf32, #tpu.memory_space<vmem>>, vector<64x16xf32>
    %cst_10 = arith.constant dense<0.000000e+00> : vector<2x16xf32>
    %10 = tpu.matmul %8, %9, %cst_10 {dimension_numbers = #tpu.dot_dimension_numbers<[1], [0], [0], [1], [0, 0, 1, 1], [], []>} : vector<2x64xf32>, vector<64x16xf32>, vector<2x16xf32> -> vector<2x16xf32>
    %c0_11 = arith.constant 0 : index
    %c0_12 = arith.constant 0 : index
    %11 = vector.load %arg6[%c0_11, %c0_12] : memref<1x16xf32, #tpu.memory_space<vmem>>, vector<1x16xf32>
    %12 = vector.broadcast %11 : vector<1x16xf32> to vector<2x16xf32>
    %13 = arith.addf %10, %12 : vector<2x16xf32>
    %cst_13 = arith.constant 0.000000e+00 : f32
    %14 = vector.broadcast %cst_13 : f32 to vector<2x16xf32>
    %15 = arith.maximumf %13, %14 : vector<2x16xf32>
    %c0_14 = arith.constant 0 : index
    %c0_15 = arith.constant 0 : index
    %16 = vector.load %arg7[%c0_14, %c0_15] : memref<16x16xf32, #tpu.memory_space<vmem>>, vector<16x16xf32>
    %cst_16 = arith.constant dense<0.000000e+00> : vector<2x16xf32>
    %17 = tpu.matmul %15, %16, %cst_16 {dimension_numbers = #tpu.dot_dimension_numbers<[1], [0], [0], [1], [0, 0, 1, 1], [], []>} : vector<2x16xf32>, vector<16x16xf32>, vector<2x16xf32> -> vector<2x16xf32>
    %c0_17 = arith.constant 0 : index
    %c0_18 = arith.constant 0 : index
    %18 = vector.load %arg8[%c0_17, %c0_18] : memref<1x16xf32, #tpu.memory_space<vmem>>, vector<1x16xf32>
    %19 = vector.broadcast %18 : vector<1x16xf32> to vector<2x16xf32>
    %20 = arith.addf %17, %19 : vector<2x16xf32>
    %21 = vector.extract_strided_slice %20 {offsets = [0, 0], sizes = [2, 8], strides = [1, 1]} : vector<2x16xf32> to vector<2x8xf32>
    %22 = vector.extract_strided_slice %20 {offsets = [0, 8], sizes = [2, 8], strides = [1, 1]} : vector<2x16xf32> to vector<2x8xf32>
    %cst_19 = arith.constant 5.000000e-01 : f32
    %23 = vector.broadcast %cst_19 : f32 to vector<2x8xf32>
    %24 = arith.mulf %23, %22 : vector<2x8xf32>
    %25 = math.exp %24 : vector<2x8xf32>
    %26 = arith.mulf %25, %1 : vector<2x8xf32>
    %27 = arith.addf %21, %26 : vector<2x8xf32>
    %c0_20 = arith.constant 0 : index
    %c0_21 = arith.constant 0 : index
    %28 = vector.load %arg9[%c0_20, %c0_21] : memref<8x16xf32, #tpu.memory_space<vmem>>, vector<8x16xf32>
    %cst_22 = arith.constant dense<0.000000e+00> : vector<2x16xf32>
    %29 = tpu.matmul %27, %28, %cst_22 {dimension_numbers = #tpu.dot_dimension_numbers<[1], [0], [0], [1], [0, 0, 1, 1], [], []>} : vector<2x8xf32>, vector<8x16xf32>, vector<2x16xf32> -> vector<2x16xf32>
    %c0_23 = arith.constant 0 : index
    %c0_24 = arith.constant 0 : index
    %30 = vector.load %arg10[%c0_23, %c0_24] : memref<1x16xf32, #tpu.memory_space<vmem>>, vector<1x16xf32>
    %31 = vector.broadcast %30 : vector<1x16xf32> to vector<2x16xf32>
    %32 = arith.addf %29, %31 : vector<2x16xf32>
    %cst_25 = arith.constant 0.000000e+00 : f32
    %33 = vector.broadcast %cst_25 : f32 to vector<2x16xf32>
    %34 = arith.maximumf %32, %33 : vector<2x16xf32>
    %c0_26 = arith.constant 0 : index
    %c0_27 = arith.constant 0 : index
    %35 = vector.load %arg11[%c0_26, %c0_27] : memref<16x64xf32, #tpu.memory_space<vmem>>, vector<16x64xf32>
    %cst_28 = arith.constant dense<0.000000e+00> : vector<2x64xf32>
    %36 = tpu.matmul %34, %35, %cst_28 {dimension_numbers = #tpu.dot_dimension_numbers<[1], [0], [0], [1], [0, 0, 1, 1], [], []>} : vector<2x16xf32>, vector<16x64xf32>, vector<2x64xf32> -> vector<2x64xf32>
    %c0_29 = arith.constant 0 : index
    %c0_30 = arith.constant 0 : index
    %37 = vector.load %arg12[%c0_29, %c0_30] : memref<1x64xf32, #tpu.memory_space<vmem>>, vector<1x64xf32>
    %38 = vector.broadcast %37 : vector<1x64xf32> to vector<2x64xf32>
    %39 = arith.addf %36, %38 : vector<2x64xf32>
    %cst_31 = arith.constant 0.000000e+00 : f32
    %40 = vector.broadcast %cst_31 : f32 to vector<2x64xf32>
    %41 = arith.maximumf %39, %40 : vector<2x64xf32>
    %c0_32 = arith.constant 0 : index
    %c0_33 = arith.constant 0 : index
    %42 = vector.load %arg13[%c0_32, %c0_33] : memref<64x256xf32, #tpu.memory_space<vmem>>, vector<64x256xf32>
    %cst_34 = arith.constant dense<0.000000e+00> : vector<2x256xf32>
    %43 = tpu.matmul %41, %42, %cst_34 {dimension_numbers = #tpu.dot_dimension_numbers<[1], [0], [0], [1], [0, 0, 1, 1], [], []>} : vector<2x64xf32>, vector<64x256xf32>, vector<2x256xf32> -> vector<2x256xf32>
    %c0_35 = arith.constant 0 : index
    %c0_36 = arith.constant 0 : index
    %44 = vector.load %arg14[%c0_35, %c0_36] : memref<1x256xf32, #tpu.memory_space<vmem>>, vector<1x256xf32>
    %45 = vector.broadcast %44 : vector<1x256xf32> to vector<2x256xf32>
    %46 = arith.addf %43, %45 : vector<2x256xf32>
    %47 = math.exp %46 : vector<2x256xf32>
    %c0_37 = arith.constant 0 : index
    %c0_38 = arith.constant 0 : index
    %48 = vector.load %arg17[%c0_37, %c0_38] : memref<2x256xf32, #tpu.memory_space<vmem>>, vector<2x256xf32>
    tpu.vector_store %arg17[%c0_37, %c0_38], %47 {strides = array<i32>} : memref<2x256xf32, #tpu.memory_space<vmem>>, vector<2x256xf32>,
    %c0_39 = arith.constant 0 : index
    %c0_40 = arith.constant 0 : index
    %49 = vector.load %arg15[%c0_39, %c0_40] : memref<8x1xf32, #tpu.memory_space<vmem>>, vector<8x1xf32>
    %cst_41 = arith.constant dense<0.000000e+00> : vector<2x1xf32>
    %50 = tpu.matmul %27, %49, %cst_41 {dimension_numbers = #tpu.dot_dimension_numbers<[1], [0], [0], [1], [0, 0, 1, 1], [], []>} : vector<2x8xf32>, vector<8x1xf32>, vector<2x1xf32> -> vector<2x1xf32>
    %c0_42 = arith.constant 0 : index
    %c0_43 = arith.constant 0 : index
    %51 = vector.load %arg16[%c0_42, %c0_43] : memref<1x1xf32, #tpu.memory_space<vmem>>, vector<1x1xf32>
    %52 = vector.broadcast %51 : vector<1x1xf32> to vector<2x1xf32>
    %53 = arith.addf %50, %52 : vector<2x1xf32>
    %c0_44 = arith.constant 0 : index
    %c0_45 = arith.constant 0 : index
    %54 = vector.load %arg18[%c0_44, %c0_45] : memref<2x17xf32, #tpu.memory_space<vmem>>, vector<2x16xf32>
    tpu.vector_store %arg18[%c0_44, %c0_45], %20 {strides = array<i32>} : memref<2x17xf32, #tpu.memory_space<vmem>>, vector<2x16xf32>,
    %c0_46 = arith.constant 0 : index
    %c16 = arith.constant 16 : index
    %55 = vector.load %arg18[%c0_46, %c16] : memref<2x17xf32, #tpu.memory_space<vmem>>, vector<2x1xf32>
    tpu.vector_store %arg18[%c0_46, %c16], %53 {strides = array<i32>} : memref<2x17xf32, #tpu.memory_space<vmem>>, vector<2x1xf32>,
    return
  }
  func.func @transform_0(%arg0: i32) -> (i32, i32) {
    %c0_i32 = arith.constant 0 : i32
    %c0_i32_0 = arith.constant 0 : i32
    return %arg0, %c0_i32 : i32, i32
  }
  func.func @transform_1(%arg0: i32) -> (i32, i32) {
    %c0_i32 = arith.constant 0 : i32
    %c0_i32_0 = arith.constant 0 : i32
    return %arg0, %c0_i32 : i32, i32
  }
  func.func @transform_2(%arg0: i32) -> (i32, i32) {
    %c0_i32 = arith.constant 0 : i32
    %c0_i32_0 = arith.constant 0 : i32
    %c0_i32_1 = arith.constant 0 : i32
    return %c0_i32, %c0_i32_0 : i32, i32
  }
  func.func @transform_3(%arg0: i32) -> (i32, i32) {
    %c0_i32 = arith.constant 0 : i32
    %c0_i32_0 = arith.constant 0 : i32
    %c0_i32_1 = arith.constant 0 : i32
    return %c0_i32, %c0_i32_0 : i32, i32
  }
  func.func @transform_4(%arg0: i32) -> (i32, i32) {
    %c0_i32 = arith.constant 0 : i32
    %c0_i32_0 = arith.constant 0 : i32
    %c0_i32_1 = arith.constant 0 : i32
    return %c0_i32, %c0_i32_0 : i32, i32
  }
  func.func @transform_5(%arg0: i32) -> (i32, i32) {
    %c0_i32 = arith.constant 0 : i32
    %c0_i32_0 = arith.constant 0 : i32
    %c0_i32_1 = arith.constant 0 : i32
    return %c0_i32, %c0_i32_0 : i32, i32
  }
  func.func @transform_6(%arg0: i32) -> (i32, i32) {
    %c0_i32 = arith.constant 0 : i32
    %c0_i32_0 = arith.constant 0 : i32
    %c0_i32_1 = arith.constant 0 : i32
    return %c0_i32, %c0_i32_0 : i32, i32
  }
  func.func @transform_7(%arg0: i32) -> (i32, i32) {
    %c0_i32 = arith.constant 0 : i32
    %c0_i32_0 = arith.constant 0 : i32
    %c0_i32_1 = arith.constant 0 : i32
    return %c0_i32, %c0_i32_0 : i32, i32
  }
  func.func @transform_8(%arg0: i32) -> (i32, i32) {
    %c0_i32 = arith.constant 0 : i32
    %c0_i32_0 = arith.constant 0 : i32
    %c0_i32_1 = arith.constant 0 : i32
    return %c0_i32, %c0_i32_0 : i32, i32
  }
  func.func @transform_9(%arg0: i32) -> (i32, i32) {
    %c0_i32 = arith.constant 0 : i32
    %c0_i32_0 = arith.constant 0 : i32
    %c0_i32_1 = arith.constant 0 : i32
    return %c0_i32, %c0_i32_0 : i32, i32
  }
  func.func @transform_10(%arg0: i32) -> (i32, i32) {
    %c0_i32 = arith.constant 0 : i32
    %c0_i32_0 = arith.constant 0 : i32
    %c0_i32_1 = arith.constant 0 : i32
    return %c0_i32, %c0_i32_0 : i32, i32
  }
  func.func @transform_11(%arg0: i32) -> (i32, i32) {
    %c0_i32 = arith.constant 0 : i32
    %c0_i32_0 = arith.constant 0 : i32
    %c0_i32_1 = arith.constant 0 : i32
    return %c0_i32, %c0_i32_0 : i32, i32
  }
  func.func @transform_12(%arg0: i32) -> (i32, i32) {
    %c0_i32 = arith.constant 0 : i32
    %c0_i32_0 = arith.constant 0 : i32
    %c0_i32_1 = arith.constant 0 : i32
    return %c0_i32, %c0_i32_0 : i32, i32
  }
  func.func @transform_13(%arg0: i32) -> (i32, i32) {
    %c0_i32 = arith.constant 0 : i32
    %c0_i32_0 = arith.constant 0 : i32
    %c0_i32_1 = arith.constant 0 : i32
    return %c0_i32, %c0_i32_0 : i32, i32
  }
  func.func @transform_14(%arg0: i32) -> (i32, i32) {
    %c0_i32 = arith.constant 0 : i32
    %c0_i32_0 = arith.constant 0 : i32
    %c0_i32_1 = arith.constant 0 : i32
    return %c0_i32, %c0_i32_0 : i32, i32
  }
  func.func @transform_15(%arg0: i32) -> (i32, i32) {
    %c0_i32 = arith.constant 0 : i32
    %c0_i32_0 = arith.constant 0 : i32
    %c0_i32_1 = arith.constant 0 : i32
    return %c0_i32, %c0_i32_0 : i32, i32
  }
  func.func @transform_16(%arg0: i32) -> (i32, i32) {
    %c0_i32 = arith.constant 0 : i32
    %c0_i32_0 = arith.constant 0 : i32
    return %arg0, %c0_i32 : i32, i32
  }
  func.func @transform_17(%arg0: i32) -> (i32, i32) {
    %c0_i32 = arith.constant 0 : i32
    %c0_i32_0 = arith.constant 0 : i32
    return %arg0, %c0_i32 : i32, i32
  }
}

</mosaic_0001>

<llo_original>
// kernel: nbvae_forward.1
$region0: #{nbvae_forward.1}
  #allocation0 [shape = 'u32[]', space=smem, size = 0x4, offset = 0x4, fixed_abs, tag = 'smem constant byte address 0x4 - core index']
  #allocation1 [shape = 'u32[144,128]{1,0:T(1,128)}', space=vmem, size = 0x12000, scoped, tag = 'internal scratch']
  #allocation2 [shape = 'f32[1,1]{1,0:T(1,128)S(1)}', space=vmem, size = 0x200, scoped, tag = 'scoped memory for nbvae_forward.1']
  %s0 = inlined_call_operand.vmem [shape: f32[2,256], index: 0, kind: input, shape index: {}]
  %s1 = inlined_call_operand.vmem [shape: f32[2,8], index: 1, kind: input, shape index: {}]
  %s2 = inlined_call_operand.vmem [shape: f32[256,64], index: 2, kind: input, shape index: {}]
  %s3 = inlined_call_operand.vmem [shape: f32[1,64], index: 3, kind: input, shape index: {}]
  %s4 = inlined_call_operand.vmem [shape: f32[64,16], index: 4, kind: input, shape index: {}]
  %s5 = inlined_call_operand.vmem [shape: f32[1,16], index: 5, kind: input, shape index: {}]
  %s6 = inlined_call_operand.vmem [shape: f32[16,16], index: 6, kind: input, shape index: {}]
  %s7 = inlined_call_operand.vmem [shape: f32[1,16], index: 7, kind: input, shape index: {}]
  %s8 = inlined_call_operand.vmem [shape: f32[8,16], index: 8, kind: input, shape index: {}]
  %s9 = inlined_call_operand.vmem [shape: f32[1,16], index: 9, kind: input, shape index: {}]
  %s10 = inlined_call_operand.vmem [shape: f32[16,64], index: 10, kind: input, shape index: {}]
  %s11 = inlined_call_operand.vmem [shape: f32[1,64], index: 11, kind: input, shape index: {}]
  %s12 = inlined_call_operand.vmem [shape: f32[64,256], index: 12, kind: input, shape index: {}]
  %s13 = inlined_call_operand.vmem [shape: f32[1,256], index: 13, kind: input, shape index: {}]
  %s14 = inlined_call_operand.vmem [shape: f32[8,1], index: 14, kind: input, shape index: {}]
  %s15 = inlined_call_operand.<no memory space> [shape: f32[1,1], index: 15, kind: input, shape index: {}]
  %s16 = inlined_call_operand.vmem [shape: f32[2,256], index: 16, kind: output, shape index: {0}]
  %s17 = inlined_call_operand.vmem [shape: f32[2,17], index: 17, kind: output, shape index: {1}]
  %18 = xla_tuple %s16, %s17
  %s19 = sld [smem:[#allocation0]]
  $region82: #{nbvae_forward.1} parent=0
    _
  %s21 = ssub.s32 1, %s19
  %s22 = scalar_select 0, %s21, %s19
  %v23 = vstv %s15
  %24 = vst [vmem:[#allocation2] sm:$0x1] %v23
  // Predicated region
  $region2: #{nbvae_forward.1} parent=0 // pred_check
    _
  $region3: #{nbvae_forward.1} parent=0 // pred_check_branch
    %26 = sbr.rel (0) target = $region5
  $region4: #{nbvae_forward.1} parent=0 // pred_region
    _
  $region5: #{nbvae_forward.1} parent=0 // pred_fallthru
    _
  // Predicated region
  $region6: #{nbvae_forward.1} parent=0 // pred_check
    _
  $region7: #{nbvae_forward.1} parent=0 // pred_check_branch
    %28 = sbr.rel (0) target = $region9
  $region8: #{nbvae_forward.1} parent=0 // pred_region
    _
  $region9: #{nbvae_forward.1} parent=0 // pred_fallthru
    _
  // Predicated region
  $region10: #{nbvae_forward.1} parent=0 // pred_check
    _
  $region11: #{nbvae_forward.1} parent=0 // pred_check_branch
    %30 = sbr.rel (0) target = $region13
  $region12: #{nbvae_forward.1} parent=0 // pred_region
    _
  $region13: #{nbvae_forward.1} parent=0 // pred_fallthru
    _
  // Predicated region
  $region14: #{nbvae_forward.1} parent=0 // pred_check
    _
  $region15: #{nbvae_forward.1} parent=0 // pred_check_branch
    %32 = sbr.rel (0) target = $region17
  $region16: #{nbvae_forward.1} parent=0 // pred_region
    _
  $region17: #{nbvae_forward.1} parent=0 // pred_fallthru
    _
  // Predicated region
  $region18: #{nbvae_forward.1} parent=0 // pred_check
    _
  $region19: #{nbvae_forward.1} parent=0 // pred_check_branch
    %34 = sbr.rel (0) target = $region21
  $region20: #{nbvae_forward.1} parent=0 // pred_region
    _
  $region21: #{nbvae_forward.1} parent=0 // pred_fallthru
    _
  // Predicated region
  $region22: #{nbvae_forward.1} parent=0 // pred_check
    _
  $region23: #{nbvae_forward.1} parent=0 // pred_check_branch
    %36 = sbr.rel (0) target = $region25
  $region24: #{nbvae_forward.1} parent=0 // pred_region
    _
  $region25: #{nbvae_forward.1} parent=0 // pred_fallthru
    _
  // Predicated region
  $region26: #{nbvae_forward.1} parent=0 // pred_check
    _
  $region27: #{nbvae_forward.1} parent=0 // pred_check_branch
    %38 = sbr.rel (0) target = $region29
  $region28: #{nbvae_forward.1} parent=0 // pred_region
    _
  $region29: #{nbvae_forward.1} parent=0 // pred_fallthru
    _
  // Predicated region
  $region30: #{nbvae_forward.1} parent=0 // pred_check
    _
  $region31: #{nbvae_forward.1} parent=0 // pred_check_branch
    %40 = sbr.rel (0) target = $region33
  $region32: #{nbvae_forward.1} parent=0 // pred_region
    _
  $region33: #{nbvae_forward.1} parent=0 // pred_fallthru
    _
  // Predicated region
  $region34: #{nbvae_forward.1} parent=0 // pred_check
    _
  $region35: #{nbvae_forward.1} parent=0 // pred_check_branch
    %42 = sbr.rel (0) target = $region37
  $region36: #{nbvae_forward.1} parent=0 // pred_region
    _
  $region37: #{nbvae_forward.1} parent=0 // pred_fallthru
    _
  // Predicated region
  $region38: #{nbvae_forward.1} parent=0 // pred_check
    _
  $region39: #{nbvae_forward.1} parent=0 // pred_check_branch
    %44 = sbr.rel (0) target = $region41
  $region40: #{nbvae_forward.1} parent=0 // pred_region
    _
  $region41: #{nbvae_forward.1} parent=0 // pred_fallthru
    _
  // Predicated region
  $region42: #{nbvae_forward.1} parent=0 // pred_check
    _
  $region43: #{nbvae_forward.1} parent=0 // pred_check_branch
    %46 = sbr.rel (0) target = $region45
  $region44: #{nbvae_forward.1} parent=0 // pred_region
    _
  $region45: #{nbvae_forward.1} parent=0 // pred_fallthru
    _
  // Predicated region
  $region46: #{nbvae_forward.1} parent=0 // pred_check
    _
  $region47: #{nbvae_forward.1} parent=0 // pred_check_branch
    %48 = sbr.rel (0) target = $region49
  $region48: #{nbvae_forward.1} parent=0 // pred_region
    _
  $region49: #{nbvae_forward.1} parent=0 // pred_fallthru
    _
  // Predicated region
  $region50: #{nbvae_forward.1} parent=0 // pred_check
    _
  $region51: #{nbvae_forward.1} parent=0 // pred_check_branch
    %50 = sbr.rel (0) target = $region53
  $region52: #{nbvae_forward.1} parent=0 // pred_region
    _
  $region53: #{nbvae_forward.1} parent=0 // pred_fallthru
    _
  // Predicated region
  $region54: #{nbvae_forward.1} parent=0 // pred_check
    _
  $region55: #{nbvae_forward.1} parent=0 // pred_check_branch
    %52 = sbr.rel (0) target = $region57
  $region56: #{nbvae_forward.1} parent=0 // pred_region
    _
  $region57: #{nbvae_forward.1} parent=0 // pred_fallthru
    _
  // Predicated region
  $region58: #{nbvae_forward.1} parent=0 // pred_check
    _
  $region59: #{nbvae_forward.1} parent=0 // pred_check_branch
    %54 = sbr.rel (0) target = $region61
  $region60: #{nbvae_forward.1} parent=0 // pred_region
    _
  $region61: #{nbvae_forward.1} parent=0 // pred_fallthru
    _
  // Predicated region
  $region62: #{nbvae_forward.1} parent=0 // pred_check
    _
  $region63: #{nbvae_forward.1} parent=0 // pred_check_branch
    %56 = sbr.rel (0) target = $region65
  $region64: #{nbvae_forward.1} parent=0 // pred_region
    _
  $region65: #{nbvae_forward.1} parent=0 // pred_fallthru
    _
  %v57 = vld [vmem:[%s0] sm:$0xf]
  %v58 = vld [vmem:[%s1] sm:$0x3]
  %v59 = vld [vmem:[%s2] sm:$0xff]
  %v60 = vld [vmem:[%s2 + $0x8] sm:$0xff]
  %v61 = vld [vmem:[%s2 + $0x10] sm:$0xff]
  %v62 = vld [vmem:[%s2 + $0x18] sm:$0xff]
  %v63 = vld [vmem:[%s2 + $0x20] sm:$0xff]
  %v64 = vld [vmem:[%s2 + $0x28] sm:$0xff]
  %v65 = vld [vmem:[%s2 + $0x30] sm:$0xff]
  %v66 = vld [vmem:[%s2 + $0x38] sm:$0xff]
  %v67 = vld [vmem:[%s2 + $0x40] sm:$0xff]
  %v68 = vld [vmem:[%s2 + $0x48] sm:$0xff]
  %v69 = vld [vmem:[%s2 + $0x50] sm:$0xff]
  %v70 = vld [vmem:[%s2 + $0x58] sm:$0xff]
  %v71 = vld [vmem:[%s2 + $0x60] sm:$0xff]
  %v72 = vld [vmem:[%s2 + $0x68] sm:$0xff]
  %v73 = vld [vmem:[%s2 + $0x70] sm:$0xff]
  %v74 = vld [vmem:[%s2 + $0x78] sm:$0xff]
  %v75 = vld [vmem:[%s2 + $0x80] sm:$0xff]
  %v76 = vld [vmem:[%s2 + $0x88] sm:$0xff]
  %v77 = vld [vmem:[%s2 + $0x90] sm:$0xff]
  %v78 = vld [vmem:[%s2 + $0x98] sm:$0xff]
  %v79 = vld [vmem:[%s2 + $0xa0] sm:$0xff]
  %v80 = vld [vmem:[%s2 + $0xa8] sm:$0xff]
  %v81 = vld [vmem:[%s2 + $0xb0] sm:$0xff]
  %v82 = vld [vmem:[%s2 + $0xb8] sm:$0xff]
  %v83 = vld [vmem:[%s2 + $0xc0] sm:$0xff]
  %v84 = vld [vmem:[%s2 + $0xc8] sm:$0xff]
  %v85 = vld [vmem:[%s2 + $0xd0] sm:$0xff]
  %v86 = vld [vmem:[%s2 + $0xd8] sm:$0xff]
  %v87 = vld [vmem:[%s2 + $0xe0] sm:$0xff]
  %v88 = vld [vmem:[%s2 + $0xe8] sm:$0xff]
  %v89 = vld [vmem:[%s2 + $0xf0] sm:$0xff]
  %v90 = vld [vmem:[%s2 + $0xf8] sm:$0xff]
  %v91 = vld [vmem:[%s3] sm:$0x1]
  %v93 = vlaneseq
  %v94 = vshrl.u32 %v93, 7
  %v95 = vsub.s32 0, %v94
  %v96 = vrot.slane %v91, %v95
  %v100 = vunpack.c.l.s4 1983009808
  %v101 = vunpack.c.0.s8 %v100
  %v102 = vlaneseq
  %v103 = vshrl.u32 %v102, 7
  %v104 = vsub.s32 %v101, %v103
  %v105 = vrot.slane %v57, %v104
  %v106 = vcombine.high %v105, %v105
  %109 = vmatprep.subr.mxu0 0.0
  %110 = vmatpush1.msra.mxu0 %v74
  %111 = vmatprep.subr.mxu0 0.0
  %112 = vmatpush1.msra.mxu0 %v73
  %113 = vmatprep.subr.mxu0 0.0
  %114 = vmatpush1.msra.mxu0 %v72
  %115 = vmatprep.subr.mxu0 0.0
  %116 = vmatpush1.msra.mxu0 %v71
  %117 = vmatprep.subr.mxu0 0.0
  %118 = vmatpush1.msra.mxu0 %v70
  %119 = vmatprep.subr.mxu0 0.0
  %120 = vmatpush1.msra.mxu0 %v69
  %121 = vmatprep.subr.mxu0 0.0
  %122 = vmatpush1.msra.mxu0 %v68
  %123 = vmatprep.subr.mxu0 0.0
  %124 = vmatpush1.msra.mxu0 %v67
  %125 = vmatprep.subr.mxu0 0.0
  %126 = vmatpush1.msra.mxu0 %v66
  %127 = vmatprep.subr.mxu0 0.0
  %128 = vmatpush1.msra.mxu0 %v65
  %129 = vmatprep.subr.mxu0 0.0
  %130 = vmatpush1.msra.mxu0 %v64
  %131 = vmatprep.subr.mxu0 0.0
  %132 = vmatpush1.msra.mxu0 %v63
  %133 = vmatprep.subr.mxu0 0.0
  %134 = vmatpush1.msra.mxu0 %v62
  %135 = vmatprep.subr.mxu0 0.0
  %136 = vmatpush1.msra.mxu0 %v61
  %137 = vmatprep.subr.mxu0 0.0
  %138 = vmatpush1.msra.mxu0 %v60
  %139 = vmatprep.subr.mxu0 0.0
  %140 = vmatpush1.msra.mxu0 %v59
  %141 = vmatprep.subr.mxu0 0.0
  %142 = vmatpush2.msra.mxu0 %v90
  %143 = vmatprep.subr.mxu0 0.0
  %144 = vmatpush2.msra.mxu0 %v89
  %145 = vmatprep.subr.mxu0 0.0
  %146 = vmatpush2.msra.mxu0 %v88
  %147 = vmatprep.subr.mxu0 0.0
  %148 = vmatpush2.msra.mxu0 %v87
  %149 = vmatprep.subr.mxu0 0.0
  %150 = vmatpush2.msra.mxu0 %v86
  %151 = vmatprep.subr.mxu0 0.0
  %152 = vmatpush2.msra.mxu0 %v85
  %153 = vmatprep.subr.mxu0 0.0
  %154 = vmatpush2.msra.mxu0 %v84
  %155 = vmatprep.subr.mxu0 0.0
  %156 = vmatpush2.msra.mxu0 %v83
  %157 = vmatprep.subr.mxu0 0.0
  %158 = vmatpush2.msra.mxu0 %v82
  %159 = vmatprep.subr.mxu0 0.0
  %160 = vmatpush2.msra.mxu0 %v81
  %161 = vmatprep.subr.mxu0 0.0
  %162 = vmatpush2.msra.mxu0 %v80
  %163 = vmatprep.subr.mxu0 0.0
  %164 = vmatpush2.msra.mxu0 %v79
  %165 = vmatprep.subr.mxu0 0.0
  %166 = vmatpush2.msra.mxu0 %v78
  %167 = vmatprep.subr.mxu0 0.0
  %168 = vmatpush2.msra.mxu0 %v77
  %169 = vmatprep.subr.mxu0 0.0
  %170 = vmatpush2.msra.mxu0 %v76
  %171 = vmatprep.subr.mxu0 0.0
  %172 = vmatpush2.msra.mxu0 %v75
  %173 = vmatprep.mubr.f32.mxu0 %v106
  %174 = vmatmul.mubr.f32.gmra.mxu0 %v105
  %v175 = vpop.f32.mrf.mxu0
  %v176 = vadd.f32 %v96, %v175
  %v177 = vpop.f32.mrf.mxu0
  %178 = vdwg.mxu0
  %v179 = vmax.f32 %v176, 0.0
  %v180 = vld [vmem:[%s4] sm:$0xff]
  %v181 = vld [vmem:[%s4 + $0x8] sm:$0xff]
  %v182 = vld [vmem:[%s4 + $0x10] sm:$0xff]
  %v183 = vld [vmem:[%s4 + $0x18] sm:$0xff]
  %v184 = vld [vmem:[%s4 + $0x20] sm:$0xff]
  %v185 = vld [vmem:[%s4 + $0x28] sm:$0xff]
  %v186 = vld [vmem:[%s4 + $0x30] sm:$0xff]
  %v187 = vld [vmem:[%s4 + $0x38] sm:$0xff]
  %v188 = vld [vmem:[%s5] sm:$0x1]
  %v190 = vlaneseq
  %v191 = vshrl.u32 %v190, 7
  %v192 = vsub.s32 0, %v191
  %v193 = vrot.slane %v188, %v192
  %vm195 = vcmask 523264
  %v197 = vsel %vm195, %v179, 0
  %199 = vmatprep.subr.mxu0 0.0
  %200 = vmatpush1.msra.mxu0 0.0
  %201 = vmatprep.subr.mxu0 0.0
  %202 = vmatpush1.msra.mxu0 0.0
  %203 = vmatprep.subr.mxu0 0.0
  %204 = vmatpush1.msra.mxu0 0.0
  %205 = vmatprep.subr.mxu0 0.0
  %206 = vmatpush1.msra.mxu0 0.0
  %207 = vmatprep.subr.mxu0 0.0
  %208 = vmatpush1.msra.mxu0 0.0
  %209 = vmatprep.subr.mxu0 0.0
  %210 = vmatpush1.msra.mxu0 0.0
  %211 = vmatprep.subr.mxu0 0.0
  %212 = vmatpush1.msra.mxu0 0.0
  %213 = vmatprep.subr.mxu0 0.0
  %214 = vmatpush1.msra.mxu0 0.0
  %215 = vmatprep.subr.mxu0 0.0
  %216 = vmatpush1.msra.mxu0 %v187
  %217 = vmatprep.subr.mxu0 0.0
  %218 = vmatpush1.msra.mxu0 %v186
  %219 = vmatprep.subr.mxu0 0.0
  %220 = vmatpush1.msra.mxu0 %v185
  %221 = vmatprep.subr.mxu0 0.0
  %222 = vmatpush1.msra.mxu0 %v184
  %223 = vmatprep.subr.mxu0 0.0
  %224 = vmatpush1.msra.mxu0 %v183
  %225 = vmatprep.subr.mxu0 0.0
  %226 = vmatpush1.msra.mxu0 %v182
  %227 = vmatprep.subr.mxu0 0.0
  %228 = vmatpush1.msra.mxu0 %v181
  %229 = vmatprep.subr.mxu0 0.0
  %230 = vmatpush1.msra.mxu0 %v180
  %231 = vmatprep.subr.mxu0 0.0
  %232 = vmatpush2.msra.mxu0 0.0
  %233 = vmatprep.subr.mxu0 0.0
  %234 = vmatpush2.msra.mxu0 0.0
  %235 = vmatprep.subr.mxu0 0.0
  %236 = vmatpush2.msra.mxu0 0.0
  %237 = vmatprep.subr.mxu0 0.0
  %238 = vmatpush2.msra.mxu0 0.0
  %239 = vmatprep.subr.mxu0 0.0
  %240 = vmatpush2.msra.mxu0 0.0
  %241 = vmatprep.subr.mxu0 0.0
  %242 = vmatpush2.msra.mxu0 0.0
  %243 = vmatprep.subr.mxu0 0.0
  %244 = vmatpush2.msra.mxu0 0.0
  %245 = vmatprep.subr.mxu0 0.0
  %246 = vmatpush2.msra.mxu0 0.0
  %247 = vmatprep.subr.mxu0 0.0
  %248 = vmatpush2.msra.mxu0 0.0
  %249 = vmatprep.subr.mxu0 0.0
  %250 = vmatpush2.msra.mxu0 0.0
  %251 = vmatprep.subr.mxu0 0.0
  %252 = vmatpush2.msra.mxu0 0.0
  %253 = vmatprep.subr.mxu0 0.0
  %254 = vmatpush2.msra.mxu0 0.0
  %255 = vmatprep.subr.mxu0 0.0
  %256 = vmatpush2.msra.mxu0 0.0
  %257 = vmatprep.subr.mxu0 0.0
  %258 = vmatpush2.msra.mxu0 0.0
  %259 = vmatprep.subr.mxu0 0.0
  %260 = vmatpush2.msra.mxu0 0.0
  %261 = vmatprep.subr.mxu0 0.0
  %262 = vmatpush2.msra.mxu0 0.0
  %263 = vmatprep.mubr.f32.mxu0 0.0
  %264 = vmatmul.mubr.f32.gmra.mxu0 %v197
  %v265 = vpop.f32.mrf.mxu0
  %v266 = vadd.f32 %v193, %v265
  %v267 = vpop.f32.mrf.mxu0
  %268 = vdwg.mxu0
  %v269 = vmax.f32 %v266, 0.0
  %v270 = vld [vmem:[%s6] sm:$0xff]
  %v271 = vld [vmem:[%s6 + $0x8] sm:$0xff]
  %v272 = vld [vmem:[%s7] sm:$0x1]
  %v274 = vlaneseq
  %v275 = vshrl.u32 %v274, 7
  %v276 = vsub.s32 0, %v275
  %v277 = vrot.slane %v272, %v276
  %vm279 = vcmask 130048
  %v281 = vsel %vm279, %v269, 0
  %283 = vmatprep.subr.mxu0 0.0
  %284 = vmatpush1.msra.mxu0 0.0
  %285 = vmatprep.subr.mxu0 0.0
  %286 = vmatpush1.msra.mxu0 0.0
  %287 = vmatprep.subr.mxu0 0.0
  %288 = vmatpush1.msra.mxu0 0.0
  %289 = vmatprep.subr.mxu0 0.0
  %290 = vmatpush1.msra.mxu0 0.0
  %291 = vmatprep.subr.mxu0 0.0
  %292 = vmatpush1.msra.mxu0 0.0
  %293 = vmatprep.subr.mxu0 0.0
  %294 = vmatpush1.msra.mxu0 0.0
  %295 = vmatprep.subr.mxu0 0.0
  %296 = vmatpush1.msra.mxu0 0.0
  %297 = vmatprep.subr.mxu0 0.0
  %298 = vmatpush1.msra.mxu0 0.0
  %299 = vmatprep.subr.mxu0 0.0
  %300 = vmatpush1.msra.mxu0 0.0
  %301 = vmatprep.subr.mxu0 0.0
  %302 = vmatpush1.msra.mxu0 0.0
  %303 = vmatprep.subr.mxu0 0.0
  %304 = vmatpush1.msra.mxu0 0.0
  %305 = vmatprep.subr.mxu0 0.0
  %306 = vmatpush1.msra.mxu0 0.0
  %307 = vmatprep.subr.mxu0 0.0
  %308 = vmatpush1.msra.mxu0 0.0
  %309 = vmatprep.subr.mxu0 0.0
  %310 = vmatpush1.msra.mxu0 0.0
  %311 = vmatprep.subr.mxu0 0.0
  %312 = vmatpush1.msra.mxu0 %v271
  %313 = vmatprep.subr.mxu0 0.0
  %314 = vmatpush1.msra.mxu0 %v270
  %315 = vmatprep.subr.mxu0 0.0
  %316 = vmatpush2.msra.mxu0 0.0
  %317 = vmatprep.subr.mxu0 0.0
  %318 = vmatpush2.msra.mxu0 0.0
  %319 = vmatprep.subr.mxu0 0.0
  %320 = vmatpush2.msra.mxu0 0.0
  %321 = vmatprep.subr.mxu0 0.0
  %322 = vmatpush2.msra.mxu0 0.0
  %323 = vmatprep.subr.mxu0 0.0
  %324 = vmatpush2.msra.mxu0 0.0
  %325 = vmatprep.subr.mxu0 0.0
  %326 = vmatpush2.msra.mxu0 0.0
  %327 = vmatprep.subr.mxu0 0.0
  %328 = vmatpush2.msra.mxu0 0.0
  %329 = vmatprep.subr.mxu0 0.0
  %330 = vmatpush2.msra.mxu0 0.0
  %331 = vmatprep.subr.mxu0 0.0
  %332 = vmatpush2.msra.mxu0 0.0
  %333 = vmatprep.subr.mxu0 0.0
  %334 = vmatpush2.msra.mxu0 0.0
  %335 = vmatprep.subr.mxu0 0.0
  %336 = vmatpush2.msra.mxu0 0.0
  %337 = vmatprep.subr.mxu0 0.0
  %338 = vmatpush2.msra.mxu0 0.0
  %339 = vmatprep.subr.mxu0 0.0
  %340 = vmatpush2.msra.mxu0 0.0
  %341 = vmatprep.subr.mxu0 0.0
  %342 = vmatpush2.msra.mxu0 0.0
  %343 = vmatprep.subr.mxu0 0.0
  %344 = vmatpush2.msra.mxu0 0.0
  %345 = vmatprep.subr.mxu0 0.0
  %346 = vmatpush2.msra.mxu0 0.0
  %347 = vmatprep.mubr.f32.mxu0 0.0
  %348 = vmatmul.mubr.f32.gmra.mxu0 %v281
  %v349 = vpop.f32.mrf.mxu0
  %v350 = vadd.f32 %v277, %v349
  %v351 = vpop.f32.mrf.mxu0
  %352 = vdwg.mxu0
  %v353 = vmul.f32 %v350, 0.5
  %v354 = vmul.f32 %v353, 1.442695
  %v355 = vpow.pop %v354
  %357 = vrot.lane.b32.xlu0 %v58, 8
  %v358 = vpop.permute.xlu0 %357
  %v360 = vmul.f32 %v355, %v358
  %362 = vrot.lane.b32.xlu0 %v360, 120
  %v363 = vpop.permute.xlu0 %362
  %v365 = vadd.f32 %v350, %v363
  %v366 = vld [vmem:[%s8] sm:$0xff]
  %v367 = vld [vmem:[%s9] sm:$0x1]
  %v369 = vlaneseq
  %v370 = vshrl.u32 %v369, 7
  %v371 = vsub.s32 0, %v370
  %v372 = vrot.slane %v367, %v371
  %vm374 = vcmask 64512
  %v376 = vsel %vm374, %v365, 0
  %378 = vmatprep.subr.mxu0 0.0
  %379 = vmatpush1.msra.mxu0 0.0
  %380 = vmatprep.subr.mxu0 0.0
  %381 = vmatpush1.msra.mxu0 0.0
  %382 = vmatprep.subr.mxu0 0.0
  %383 = vmatpush1.msra.mxu0 0.0
  %384 = vmatprep.subr.mxu0 0.0
  %385 = vmatpush1.msra.mxu0 0.0
  %386 = vmatprep.subr.mxu0 0.0
  %387 = vmatpush1.msra.mxu0 0.0
  %388 = vmatprep.subr.mxu0 0.0
  %389 = vmatpush1.msra.mxu0 0.0
  %390 = vmatprep.subr.mxu0 0.0
  %391 = vmatpush1.msra.mxu0 0.0
  %392 = vmatprep.subr.mxu0 0.0
  %393 = vmatpush1.msra.mxu0 0.0
  %394 = vmatprep.subr.mxu0 0.0
  %395 = vmatpush1.msra.mxu0 0.0
  %396 = vmatprep.subr.mxu0 0.0
  %397 = vmatpush1.msra.mxu0 0.0
  %398 = vmatprep.subr.mxu0 0.0
  %399 = vmatpush1.msra.mxu0 0.0
  %400 = vmatprep.subr.mxu0 0.0
  %401 = vmatpush1.msra.mxu0 0.0
  %402 = vmatprep.subr.mxu0 0.0
  %403 = vmatpush1.msra.mxu0 0.0
  %404 = vmatprep.subr.mxu0 0.0
  %405 = vmatpush1.msra.mxu0 0.0
  %406 = vmatprep.subr.mxu0 0.0
  %407 = vmatpush1.msra.mxu0 0.0
  %408 = vmatprep.subr.mxu0 0.0
  %409 = vmatpush1.msra.mxu0 %v366
  %410 = vmatprep.subr.mxu0 0.0
  %411 = vmatpush2.msra.mxu0 0.0
  %412 = vmatprep.subr.mxu0 0.0
  %413 = vmatpush2.msra.mxu0 0.0
  %414 = vmatprep.subr.mxu0 0.0
  %415 = vmatpush2.msra.mxu0 0.0
  %416 = vmatprep.subr.mxu0 0.0
  %417 = vmatpush2.msra.mxu0 0.0
  %418 = vmatprep.subr.mxu0 0.0
  %419 = vmatpush2.msra.mxu0 0.0
  %420 = vmatprep.subr.mxu0 0.0
  %421 = vmatpush2.msra.mxu0 0.0
  %422 = vmatprep.subr.mxu0 0.0
  %423 = vmatpush2.msra.mxu0 0.0
  %424 = vmatprep.subr.mxu0 0.0
  %425 = vmatpush2.msra.mxu0 0.0
  %426 = vmatprep.subr.mxu0 0.0
  %427 = vmatpush2.msra.mxu0 0.0
  %428 = vmatprep.subr.mxu0 0.0
  %429 = vmatpush2.msra.mxu0 0.0
  %430 = vmatprep.subr.mxu0 0.0
  %431 = vmatpush2.msra.mxu0 0.0
  %432 = vmatprep.subr.mxu0 0.0
  %433 = vmatpush2.msra.mxu0 0.0
  %434 = vmatprep.subr.mxu0 0.0
  %435 = vmatpush2.msra.mxu0 0.0
  %436 = vmatprep.subr.mxu0 0.0
  %437 = vmatpush2.msra.mxu0 0.0
  %438 = vmatprep.subr.mxu0 0.0
  %439 = vmatpush2.msra.mxu0 0.0
  %440 = vmatprep.subr.mxu0 0.0
  %441 = vmatpush2.msra.mxu0 0.0
  %442 = vmatprep.mubr.f32.mxu0 0.0
  %443 = vmatmul.mubr.f32.gmra.mxu0 %v376
  %v444 = vpop.f32.mrf.mxu0
  %v445 = vadd.f32 %v372, %v444
  %v446 = vpop.f32.mrf.mxu0
  %447 = vdwg.mxu0
  %v448 = vmax.f32 %v445, 0.0
  %v449 = vld [vmem:[%s10] sm:$0xff]
  %v450 = vld [vmem:[%s10 + $0x8] sm:$0xff]
  %v451 = vld [vmem:[%s11] sm:$0x1]
  %v453 = vlaneseq
  %v454 = vshrl.u32 %v453, 7
  %v455 = vsub.s32 0, %v454
  %v456 = vrot.slane %v451, %v455
  %v459 = vsel %vm279, %v448, 0
  %461 = vmatprep.subr.mxu0 0.0
  %462 = vmatpush1.msra.mxu0 0.0
  %463 = vmatprep.subr.mxu0 0.0
  %464 = vmatpush1.msra.mxu0 0.0
  %465 = vmatprep.subr.mxu0 0.0
  %466 = vmatpush1.msra.mxu0 0.0
  %467 = vmatprep.subr.mxu0 0.0
  %468 = vmatpush1.msra.mxu0 0.0
  %469 = vmatprep.subr.mxu0 0.0
  %470 = vmatpush1.msra.mxu0 0.0
  %471 = vmatprep.subr.mxu0 0.0
  %472 = vmatpush1.msra.mxu0 0.0
  %473 = vmatprep.subr.mxu0 0.0
  %474 = vmatpush1.msra.mxu0 0.0
  %475 = vmatprep.subr.mxu0 0.0
  %476 = vmatpush1.msra.mxu0 0.0
  %477 = vmatprep.subr.mxu0 0.0
  %478 = vmatpush1.msra.mxu0 0.0
  %479 = vmatprep.subr.mxu0 0.0
  %480 = vmatpush1.msra.mxu0 0.0
  %481 = vmatprep.subr.mxu0 0.0
  %482 = vmatpush1.msra.mxu0 0.0
  %483 = vmatprep.subr.mxu0 0.0
  %484 = vmatpush1.msra.mxu0 0.0
  %485 = vmatprep.subr.mxu0 0.0
  %486 = vmatpush1.msra.mxu0 0.0
  %487 = vmatprep.subr.mxu0 0.0
  %488 = vmatpush1.msra.mxu0 0.0
  %489 = vmatprep.subr.mxu0 0.0
  %490 = vmatpush1.msra.mxu0 %v450
  %491 = vmatprep.subr.mxu0 0.0
  %492 = vmatpush1.msra.mxu0 %v449
  %493 = vmatprep.subr.mxu0 0.0
  %494 = vmatpush2.msra.mxu0 0.0
  %495 = vmatprep.subr.mxu0 0.0
  %496 = vmatpush2.msra.mxu0 0.0
  %497 = vmatprep.subr.mxu0 0.0
  %498 = vmatpush2.msra.mxu0 0.0
  %499 = vmatprep.subr.mxu0 0.0
  %500 = vmatpush2.msra.mxu0 0.0
  %501 = vmatprep.subr.mxu0 0.0
  %502 = vmatpush2.msra.mxu0 0.0
  %503 = vmatprep.subr.mxu0 0.0
  %504 = vmatpush2.msra.mxu0 0.0
  %505 = vmatprep.subr.mxu0 0.0
  %506 = vmatpush2.msra.mxu0 0.0
  %507 = vmatprep.subr.mxu0 0.0
  %508 = vmatpush2.msra.mxu0 0.0
  %509 = vmatprep.subr.mxu0 0.0
  %510 = vmatpush2.msra.mxu0 0.0
  %511 = vmatprep.subr.mxu0 0.0
  %512 = vmatpush2.msra.mxu0 0.0
  %513 = vmatprep.subr.mxu0 0.0
  %514 = vmatpush2.msra.mxu0 0.0
  %515 = vmatprep.subr.mxu0 0.0
  %516 = vmatpush2.msra.mxu0 0.0
  %517 = vmatprep.subr.mxu0 0.0
  %518 = vmatpush2.msra.mxu0 0.0
  %519 = vmatprep.subr.mxu0 0.0
  %520 = vmatpush2.msra.mxu0 0.0
  %521 = vmatprep.subr.mxu0 0.0
  %522 = vmatpush2.msra.mxu0 0.0
  %523 = vmatprep.subr.mxu0 0.0
  %524 = vmatpush2.msra.mxu0 0.0
  %525 = vmatprep.mubr.f32.mxu0 0.0
  %526 = vmatmul.mubr.f32.gmra.mxu0 %v459
  %v527 = vpop.f32.mrf.mxu0
  %v528 = vadd.f32 %v456, %v527
  %v529 = vpop.f32.mrf.mxu0
  %530 = vdwg.mxu0
  %v531 = vmax.f32 %v528, 0.0
  %v532 = vld [vmem:[%s12] sm:$0xff]
  %v533 = vld [vmem:[%s12 + $0x8] sm:$0xff]
  %v534 = vld [vmem:[%s12 + $0x10] sm:$0xff]
  %v535 = vld [vmem:[%s12 + $0x18] sm:$0xff]
  %v536 = vld [vmem:[%s12 + $0x20] sm:$0xff]
  %v537 = vld [vmem:[%s12 + $0x28] sm:$0xff]
  %v538 = vld [vmem:[%s12 + $0x30] sm:$0xff]
  %v539 = vld [vmem:[%s12 + $0x38] sm:$0xff]
  %v540 = vld [vmem:[%s12 + $0x40] sm:$0xff]
  %v541 = vld [vmem:[%s12 + $0x48] sm:$0xff]
  %v542 = vld [vmem:[%s12 + $0x50] sm:$0xff]
  %v543 = vld [vmem:[%s12 + $0x58] sm:$0xff]
  %v544 = vld [vmem:[%s12 + $0x60] sm:$0xff]
  %v545 = vld [vmem:[%s12 + $0x68] sm:$0xff]
  %v546 = vld [vmem:[%s12 + $0x70] sm:$0xff]
  %v547 = vld [vmem:[%s12 + $0x78] sm:$0xff]
  %v548 = vld [vmem:[%s13] sm:$0x3]
  %v550 = vlaneseq
  %v551 = vshrl.u32 %v550, 7
  %v552 = vsub.s32 0, %v551
  %v553 = vrot.slane %v548, %v552
  %v554 = vlaneseq
  %v555 = vshrl.u32 %v554, 7
  %v556 = vsub.s32 1, %v555
  %v557 = vrot.slane %v548, %v556
  %v561 = vsel %vm195, %v531, 0
  %563 = vmatprep.subr.mxu0 0.0
  %564 = vmatpush1.msra.mxu0 0.0
  %565 = vmatprep.subr.mxu0 0.0
  %566 = vmatpush1.msra.mxu0 0.0
  %567 = vmatprep.subr.mxu0 0.0
  %568 = vmatpush1.msra.mxu0 0.0
  %569 = vmatprep.subr.mxu0 0.0
  %570 = vmatpush1.msra.mxu0 0.0
  %571 = vmatprep.subr.mxu0 0.0
  %572 = vmatpush1.msra.mxu0 0.0
  %573 = vmatprep.subr.mxu0 0.0
  %574 = vmatpush1.msra.mxu0 0.0
  %575 = vmatprep.subr.mxu0 0.0
  %576 = vmatpush1.msra.mxu0 0.0
  %577 = vmatprep.subr.mxu0 0.0
  %578 = vmatpush1.msra.mxu0 0.0
  %579 = vmatprep.subr.mxu0 %v547
  %580 = vmatpush1.msra.mxu0 %v546
  %581 = vmatprep.subr.mxu0 %v545
  %582 = vmatpush1.msra.mxu0 %v544
  %583 = vmatprep.subr.mxu0 %v543
  %584 = vmatpush1.msra.mxu0 %v542
  %585 = vmatprep.subr.mxu0 %v541
  %586 = vmatpush1.msra.mxu0 %v540
  %587 = vmatprep.subr.mxu0 %v539
  %588 = vmatpush1.msra.mxu0 %v538
  %589 = vmatprep.subr.mxu0 %v537
  %590 = vmatpush1.msra.mxu0 %v536
  %591 = vmatprep.subr.mxu0 %v535
  %592 = vmatpush1.msra.mxu0 %v534
  %593 = vmatprep.subr.mxu0 %v533
  %594 = vmatpush1.msra.mxu0 %v532
  %595 = vmatprep.subr.mxu0 0.0
  %596 = vmatpush2.msra.mxu0 0.0
  %597 = vmatprep.subr.mxu0 0.0
  %598 = vmatpush2.msra.mxu0 0.0
  %599 = vmatprep.subr.mxu0 0.0
  %600 = vmatpush2.msra.mxu0 0.0
  %601 = vmatprep.subr.mxu0 0.0
  %602 = vmatpush2.msra.mxu0 0.0
  %603 = vmatprep.subr.mxu0 0.0
  %604 = vmatpush2.msra.mxu0 0.0
  %605 = vmatprep.subr.mxu0 0.0
  %606 = vmatpush2.msra.mxu0 0.0
  %607 = vmatprep.subr.mxu0 0.0
  %608 = vmatpush2.msra.mxu0 0.0
  %609 = vmatprep.subr.mxu0 0.0
  %610 = vmatpush2.msra.mxu0 0.0
  %611 = vmatprep.subr.mxu0 0.0
  %612 = vmatpush2.msra.mxu0 0.0
  %613 = vmatprep.subr.mxu0 0.0
  %614 = vmatpush2.msra.mxu0 0.0
  %615 = vmatprep.subr.mxu0 0.0
  %616 = vmatpush2.msra.mxu0 0.0
  %617 = vmatprep.subr.mxu0 0.0
  %618 = vmatpush2.msra.mxu0 0.0
  %619 = vmatprep.subr.mxu0 0.0
  %620 = vmatpush2.msra.mxu0 0.0
  %621 = vmatprep.subr.mxu0 0.0
  %622 = vmatpush2.msra.mxu0 0.0
  %623 = vmatprep.subr.mxu0 0.0
  %624 = vmatpush2.msra.mxu0 0.0
  %625 = vmatprep.subr.mxu0 0.0
  %626 = vmatpush2.msra.mxu0 0.0
  %627 = vmatprep.mubr.f32.mxu0 0.0
  %628 = vmatmul.mubr.f32.gmra.mxu0 %v561
  %v629 = vpop.f32.mrf.mxu0
  %v630 = vadd.f32 %v553, %v629
  %v631 = vpop.f32.mrf.mxu0
  %v632 = vadd.f32 %v557, %v631
  %633 = vdwg.mxu0
  %v634 = vmul.f32 %v630, 1.442695
  %v635 = vpow.pop %v634
  %v636 = vmul.f32 %v632, 1.442695
  %v637 = vpow.pop %v636
  %v640 = vcombine.low %v635, %v637
  %v642 = vunpack.c.l.s4 1983009808
  %v643 = vunpack.c.0.s8 %v642
  %v644 = vlaneseq
  %v645 = vshrl.u32 %v644, 7
  %v646 = vsub.s32 %v643, %v645
  %v647 = vrot.slane %v640, %v646
  %649 = vst [vmem:[%s16] sm:$0xf] %v647
  %v650 = vld [vmem:[%s14] sm:$0xff]
  %v651 = vld [vmem:[#allocation2] sm:$0x1]
  %v653 = vlaneseq
  %v654 = vshrl.u32 %v653, 7
  %v655 = vsub.s32 0, %v654
  %v656 = vrot.slane %v651, %v655
  %658 = vmatprep.subr.mxu0 0.0
  %659 = vmatpush1.msra.mxu0 0.0
  %660 = vmatprep.subr.mxu0 0.0
  %661 = vmatpush1.msra.mxu0 0.0
  %662 = vmatprep.subr.mxu0 0.0
  %663 = vmatpush1.msra.mxu0 0.0
  %664 = vmatprep.subr.mxu0 0.0
  %665 = vmatpush1.msra.mxu0 0.0
  %666 = vmatprep.subr.mxu0 0.0
  %667 = vmatpush1.msra.mxu0 0.0
  %668 = vmatprep.subr.mxu0 0.0
  %669 = vmatpush1.msra.mxu0 0.0
  %670 = vmatprep.subr.mxu0 0.0
  %671 = vmatpush1.msra.mxu0 0.0
  %672 = vmatprep.subr.mxu0 0.0
  %673 = vmatpush1.msra.mxu0 0.0
  %674 = vmatprep.subr.mxu0 0.0
  %675 = vmatpush1.msra.mxu0 0.0
  %676 = vmatprep.subr.mxu0 0.0
  %677 = vmatpush1.msra.mxu0 0.0
  %678 = vmatprep.subr.mxu0 0.0
  %679 = vmatpush1.msra.mxu0 0.0
  %680 = vmatprep.subr.mxu0 0.0
  %681 = vmatpush1.msra.mxu0 0.0
  %682 = vmatprep.subr.mxu0 0.0
  %683 = vmatpush1.msra.mxu0 0.0
  %684 = vmatprep.subr.mxu0 0.0
  %685 = vmatpush1.msra.mxu0 0.0
  %686 = vmatprep.subr.mxu0 0.0
  %687 = vmatpush1.msra.mxu0 0.0
  %688 = vmatprep.subr.mxu0 0.0
  %689 = vmatpush1.msra.mxu0 %v650
  %690 = vmatprep.subr.mxu0 0.0
  %691 = vmatpush2.msra.mxu0 0.0
  %692 = vmatprep.subr.mxu0 0.0
  %693 = vmatpush2.msra.mxu0 0.0
  %694 = vmatprep.subr.mxu0 0.0
  %695 = vmatpush2.msra.mxu0 0.0
  %696 = vmatprep.subr.mxu0 0.0
  %697 = vmatpush2.msra.mxu0 0.0
  %698 = vmatprep.subr.mxu0 0.0
  %699 = vmatpush2.msra.mxu0 0.0
  %700 = vmatprep.subr.mxu0 0.0
  %701 = vmatpush2.msra.mxu0 0.0
  %702 = vmatprep.subr.mxu0 0.0
  %703 = vmatpush2.msra.mxu0 0.0
  %704 = vmatprep.subr.mxu0 0.0
  %705 = vmatpush2.msra.mxu0 0.0
  %706 = vmatprep.subr.mxu0 0.0
  %707 = vmatpush2.msra.mxu0 0.0
  %708 = vmatprep.subr.mxu0 0.0
  %709 = vmatpush2.msra.mxu0 0.0
  %710 = vmatprep.subr.mxu0 0.0
  %711 = vmatpush2.msra.mxu0 0.0
  %712 = vmatprep.subr.mxu0 0.0
  %713 = vmatpush2.msra.mxu0 0.0
  %714 = vmatprep.subr.mxu0 0.0
  %715 = vmatpush2.msra.mxu0 0.0
  %716 = vmatprep.subr.mxu0 0.0
  %717 = vmatpush2.msra.mxu0 0.0
  %718 = vmatprep.subr.mxu0 0.0
  %719 = vmatpush2.msra.mxu0 0.0
  %720 = vmatprep.subr.mxu0 0.0
  %721 = vmatpush2.msra.mxu0 0.0
  %722 = vmatprep.mubr.f32.mxu0 0.0
  %723 = vmatmul.mubr.f32.gmra.mxu0 %v376
  %v724 = vpop.f32.mrf.mxu0
  %v725 = vadd.f32 %v656, %v724
  %v726 = vpop.f32.mrf.mxu0
  %727 = vdwg.mxu0
  %vm728 = vcmask 123904
  %729 = vst.msk [vmem:[%s17] sm:$0x3] %vm728, %v350
  %731 = vrot.lane.b32.xlu0 %v725, 16
  %v732 = vpop.permute.xlu0 %731
  %vm734 = vcmask 132224
  %735 = vst.msk [vmem:[%s17] sm:$0x3] %vm734, %v732
  // Predicated region
  $region66: #{nbvae_forward.1} parent=0 // pred_check
    _
  $region67: #{nbvae_forward.1} parent=0 // pred_check_branch
    %737 = sbr.rel (0) target = $region69
  $region68: #{nbvae_forward.1} parent=0 // pred_region
    _
  $region69: #{nbvae_forward.1} parent=0 // pred_fallthru
    _
  // Predicated region
  $region70: #{nbvae_forward.1} parent=0 // pred_check
    _
  $region71: #{nbvae_forward.1} parent=0 // pred_check_branch
    %739 = sbr.rel (0) target = $region73
  $region72: #{nbvae_forward.1} parent=0 // pred_region
    _
  $region73: #{nbvae_forward.1} parent=0 // pred_fallthru
    _
  // Predicated region
  $region74: #{nbvae_forward.1} parent=0 // pred_check
    _
  $region75: #{nbvae_forward.1} parent=0 // pred_check_branch
    %741 = sbr.rel (0) target = $region77
  $region76: #{nbvae_forward.1} parent=0 // pred_region
    _
  $region77: #{nbvae_forward.1} parent=0 // pred_fallthru
    _
  // Predicated region
  $region78: #{nbvae_forward.1} parent=0 // pred_check
    _
  $region79: #{nbvae_forward.1} parent=0 // pred_check_branch
    %743 = sbr.rel (0) target = $region81
  $region80: #{nbvae_forward.1} parent=0 // pred_region
    _
  $region81: #{nbvae_forward.1} parent=0 // pred_fallthru
    _

</llo_original>
